<compile_context>
chip_gen: v6e
topology: v6e:2x2x1
jax: 0.10.0
libtpu: 0.0.40
codegen_flags: <defaults>
</compile_context>

<pallas_src>
import functools

import jax
import jax.numpy as jnp
from jax.experimental import pallas as pl
from jax.experimental.pallas import tpu as pltpu

LOG_STD_MIN = -20.0
LOG_STD_MAX = 2.0
LANE = 128


def _actor_kernel(action_dim, s_ref, w1_ref, b1_ref, w2_ref, b2_ref,
                  wh_ref, bh_ref, out_ref):
    # fc1 + relu. Weights arrive bf16 (halved DMA); upcast in VMEM and keep the
    # matmul + elementwise path in f32 (v5e VPU has no bf16 ALUs).
    x = jnp.dot(s_ref[...], w1_ref[...].astype(jnp.float32),
                preferred_element_type=jnp.float32)
    x = jnp.maximum(x + b1_ref[...], 0.0)
    # fc2 + relu
    x = jnp.dot(x, w2_ref[...].astype(jnp.float32),
                preferred_element_type=jnp.float32)
    x = jnp.maximum(x + b2_ref[...], 0.0)
    # Fused heads: columns are [mean | log_std | zero pad]; one lane-dense
    # (last dim = 128) matmul + one unmasked store instead of two N=4 heads.
    head = jnp.dot(x, wh_ref[...].astype(jnp.float32),
                   preferred_element_type=jnp.float32) + bh_ref[...]
    # Clamp only the log_std columns.
    col = jax.lax.broadcasted_iota(jnp.int32, head.shape, dimension=1)
    is_logstd = (col >= action_dim) & (col < 2 * action_dim)
    out_ref[...] = jnp.where(is_logstd,
                             jnp.clip(head, LOG_STD_MIN, LOG_STD_MAX),
                             head)


def prepare_actor_params(params, action_dim):
    """One-time layout plumbing (outside the kernel): fuse mean/log_std head
    weights into a single lane-dense [hidden, 128*k] slab and cast weights to
    bf16. Biases stay f32."""
    n_out = max(LANE, ((2 * action_dim + LANE - 1) // LANE) * LANE)
    wh = jnp.concatenate([params["wm"], params["wl"]], axis=1)
    bh = jnp.concatenate([params["bm"], params["bl"]], axis=1)
    wh = jnp.pad(wh, ((0, 0), (0, n_out - 2 * action_dim)))
    bh = jnp.pad(bh, ((0, 0), (0, n_out - 2 * action_dim)))
    return dict(
        w1=params["w1"].astype(jnp.bfloat16), b1=params["b1"],
        w2=params["w2"].astype(jnp.bfloat16), b2=params["b2"],
        wh=wh.astype(jnp.bfloat16), bh=bh,
        action_dim=action_dim, n_out=n_out)


def actor_forward(state, prep):
    """state: [B, state_dim] f32. prep: output of prepare_actor_params.
    Returns (mean [B, action_dim], log_std [B, action_dim])."""
    B, state_dim = state.shape
    action_dim = prep["action_dim"]
    n_out = prep["n_out"]
    hidden = prep["w2"].shape[0]

    # Batch tile: multiple of 8 sublanes, up to 128 rows per grid step.
    tb = min(128, ((B + 7) // 8) * 8)
    b_pad = ((B + tb - 1) // tb) * tb
    if b_pad != B:
        state = jnp.pad(state, ((0, b_pad - B), (0, 0)))
    nb = b_pad // tb

    flops = 2 * b_pad * (state_dim * hidden + hidden * hidden + hidden * n_out)
    bytes_accessed = (
        (prep["w1"].size + prep["w2"].size + prep["wh"].size) * 2  # bf16
        + (prep["b1"].size + prep["b2"].size + prep["bh"].size) * 4
        + b_pad * (state_dim + n_out) * 4)

    out = pl.pallas_call(
        functools.partial(_actor_kernel, action_dim),
        out_shape=jax.ShapeDtypeStruct((b_pad, n_out), jnp.float32),
        grid=(nb,),
        in_specs=[
            pl.BlockSpec((tb, state_dim), lambda i: (i, 0)),
            # Weights/biases: constant block index -> stay resident in VMEM
            # across batch tiles (no per-step re-DMA).
            pl.BlockSpec((state_dim, hidden), lambda i: (0, 0)),
            pl.BlockSpec((1, hidden), lambda i: (0, 0)),
            pl.BlockSpec((hidden, hidden), lambda i: (0, 0)),
            pl.BlockSpec((1, hidden), lambda i: (0, 0)),
            pl.BlockSpec((hidden, n_out), lambda i: (0, 0)),
            pl.BlockSpec((1, n_out), lambda i: (0, 0)),
        ],
        out_specs=pl.BlockSpec((tb, n_out), lambda i: (i, 0)),
        compiler_params=pltpu.CompilerParams(
            dimension_semantics=("parallel",)),
        cost_estimate=pl.CostEstimate(
            flops=flops, transcendentals=0, bytes_accessed=bytes_accessed),
    )(state, prep["w1"], prep["b1"], prep["w2"], prep["b2"],
      prep["wh"], prep["bh"])

    mean = out[:B, :action_dim]
    log_std = out[:B, action_dim:2 * action_dim]
    return mean, log_std


def init_actor_params(key, state_dim, hidden_dim, action_dim):
    """PyTorch-style init: U(-1/sqrt(fan_in), 1/sqrt(fan_in)).
    Weights stored as [in, out] (transposed vs nn.Linear)."""
    def linear(k, fan_in, fan_out):
        kw, kb = jax.random.split(k)
        bound = 1.0 / jnp.sqrt(jnp.float32(fan_in))
        w = jax.random.uniform(kw, (fan_in, fan_out), jnp.float32, -bound, bound)
        b = jax.random.uniform(kb, (1, fan_out), jnp.float32, -bound, bound)
        return w, b

    k1, k2, k3, k4 = jax.random.split(key, 4)
    w1, b1 = linear(k1, state_dim, hidden_dim)
    w2, b2 = linear(k2, hidden_dim, hidden_dim)
    wm, bm = linear(k3, hidden_dim, action_dim)
    wl, bl = linear(k4, hidden_dim, action_dim)
    return dict(w1=w1, b1=b1, w2=w2, b2=b2, wm=wm, bm=bm, wl=wl, bl=bl)


def reference_forward(state, params):
    """Pure-JAX reference using the same bf16-rounded weights the kernel sees."""
    hp = jax.lax.Precision.HIGHEST
    w1 = params["w1"].astype(jnp.bfloat16).astype(jnp.float32)
    w2 = params["w2"].astype(jnp.bfloat16).astype(jnp.float32)
    wm = params["wm"].astype(jnp.bfloat16).astype(jnp.float32)
    wl = params["wl"].astype(jnp.bfloat16).astype(jnp.float32)
    x = jnp.maximum(jnp.dot(state, w1, precision=hp) + params["b1"], 0.0)
    x = jnp.maximum(jnp.dot(x, w2, precision=hp) + params["b2"], 0.0)
    mean = jnp.dot(x, wm, precision=hp) + params["bm"]
    log_std = jnp.clip(jnp.dot(x, wl, precision=hp) + params["bl"],
                       LOG_STD_MIN, LOG_STD_MAX)
    return mean, log_std


# TODO(synk): Actor.sample() (Normal.rsample + tanh) is not part of forward();
# it is left to host-side JAX (jax.random.normal + jnp.tanh) if needed.


if __name__ == "__main__":
    # Small env-like shapes consistent with the module.
    batch = 8
    state_dim = 8       # env.observation_space.shape[0]
    hidden_dim = 256    # matches module
    action_dim = 4      # env.action_space.shape[0]

    key = jax.random.PRNGKey(0)
    kp, ks = jax.random.split(key)
    params = init_actor_params(kp, state_dim, hidden_dim, action_dim)
    state = jax.random.normal(ks, (batch, state_dim), jnp.float32)

    prep = prepare_actor_params(params, action_dim)
    mean, log_std = actor_forward(state, prep)
    jax.block_until_ready((mean, log_std))

    ref_mean, ref_log_std = reference_forward(state, params)
    assert mean.shape == (batch, action_dim)
    assert log_std.shape == (batch, action_dim)
    assert jnp.allclose(mean, ref_mean, atol=1e-3, rtol=1e-3)
    assert jnp.allclose(log_std, ref_log_std, atol=1e-3, rtol=1e-3)
    assert bool(jnp.all(log_std <= LOG_STD_MAX)) and bool(jnp.all(log_std >= LOG_STD_MIN))

    print("KERNEL_OK")
</pallas_src>

<mosaic_0001>
module attributes {stable_mosaic.version = 11 : i64} {
  func.func @_actor_kernel(%arg0: i32, %arg1: memref<8x8xf32, #tpu.memory_space<vmem>>, %arg2: memref<8x256xbf16, #tpu.memory_space<vmem>>, %arg3: memref<1x256xf32, #tpu.memory_space<vmem>>, %arg4: memref<256x256xbf16, #tpu.memory_space<vmem>>, %arg5: memref<1x256xf32, #tpu.memory_space<vmem>>, %arg6: memref<256x128xbf16, #tpu.memory_space<vmem>>, %arg7: memref<1x128xf32, #tpu.memory_space<vmem>>, %arg8: memref<8x128xf32, #tpu.memory_space<vmem>>) attributes {dimension_semantics = [#tpu.dimension_semantics<parallel>], iteration_bounds = array<i64: 1>, scalar_prefetch = 0 : i64, scratch_operands = 0 : i64, tpu.core_type = #tpu.core_type<tc>, window_params = [{transform_indices = @transform_0, window_bounds = array<i64: 8, 8>}, {pipeline_mode = #tpu.pipeline_mode<synchronous>, transform_indices = @transform_1, window_bounds = array<i64: 8, 256>}, {pipeline_mode = #tpu.pipeline_mode<synchronous>, transform_indices = @transform_2, window_bounds = array<i64: 1, 256>}, {pipeline_mode = #tpu.pipeline_mode<synchronous>, transform_indices = @transform_3, window_bounds = array<i64: 256, 256>}, {pipeline_mode = #tpu.pipeline_mode<synchronous>, transform_indices = @transform_4, window_bounds = array<i64: 1, 256>}, {pipeline_mode = #tpu.pipeline_mode<synchronous>, transform_indices = @transform_5, window_bounds = array<i64: 256, 128>}, {pipeline_mode = #tpu.pipeline_mode<synchronous>, transform_indices = @transform_6, window_bounds = array<i64: 1, 128>}, {transform_indices = @transform_7, window_bounds = array<i64: 8, 128>}]} {
    %c0 = arith.constant 0 : index
    %c0_0 = arith.constant 0 : index
    %0 = vector.load %arg1[%c0, %c0_0] : memref<8x8xf32, #tpu.memory_space<vmem>>, vector<8x8xf32>
    %c0_1 = arith.constant 0 : index
    %c0_2 = arith.constant 0 : index
    %1 = vector.load %arg2[%c0_1, %c0_2] : memref<8x256xbf16, #tpu.memory_space<vmem>>, vector<8x256xbf16>
    %2 = arith.extf %1 : vector<8x256xbf16> to vector<8x256xf32>
    %cst = arith.constant dense<0.000000e+00> : vector<8x256xf32>
    %3 = tpu.matmul %0, %2, %cst {dimension_numbers = #tpu.dot_dimension_numbers<[1], [0], [0], [1], [0, 0, 1, 1], [], []>} : vector<8x8xf32>, vector<8x256xf32>, vector<8x256xf32> -> vector<8x256xf32>
    %c0_3 = arith.constant 0 : index
    %c0_4 = arith.constant 0 : index
    %4 = vector.load %arg3[%c0_3, %c0_4] : memref<1x256xf32, #tpu.memory_space<vmem>>, vector<1x256xf32>
    %5 = vector.broadcast %4 : vector<1x256xf32> to vector<8x256xf32>
    %6 = arith.addf %3, %5 : vector<8x256xf32>
    %cst_5 = arith.constant 0.000000e+00 : f32
    %7 = vector.broadcast %cst_5 : f32 to vector<8x256xf32>
    %8 = arith.maximumf %6, %7 : vector<8x256xf32>
    %c0_6 = arith.constant 0 : index
    %c0_7 = arith.constant 0 : index
    %9 = vector.load %arg4[%c0_6, %c0_7] : memref<256x256xbf16, #tpu.memory_space<vmem>>, vector<256x256xbf16>
    %10 = arith.extf %9 : vector<256x256xbf16> to vector<256x256xf32>
    %cst_8 = arith.constant dense<0.000000e+00> : vector<8x256xf32>
    %11 = tpu.matmul %8, %10, %cst_8 {dimension_numbers = #tpu.dot_dimension_numbers<[1], [0], [0], [1], [0, 0, 1, 1], [], []>} : vector<8x256xf32>, vector<256x256xf32>, vector<8x256xf32> -> vector<8x256xf32>
    %c0_9 = arith.constant 0 : index
    %c0_10 = arith.constant 0 : index
    %12 = vector.load %arg5[%c0_9, %c0_10] : memref<1x256xf32, #tpu.memory_space<vmem>>, vector<1x256xf32>
    %13 = vector.broadcast %12 : vector<1x256xf32> to vector<8x256xf32>
    %14 = arith.addf %11, %13 : vector<8x256xf32>
    %cst_11 = arith.constant 0.000000e+00 : f32
    %15 = vector.broadcast %cst_11 : f32 to vector<8x256xf32>
    %16 = arith.maximumf %14, %15 : vector<8x256xf32>
    %c0_12 = arith.constant 0 : index
    %c0_13 = arith.constant 0 : index
    %17 = vector.load %arg6[%c0_12, %c0_13] : memref<256x128xbf16, #tpu.memory_space<vmem>>, vector<256x128xbf16>
    %18 = arith.extf %17 : vector<256x128xbf16> to vector<256x128xf32>
    %cst_14 = arith.constant dense<0.000000e+00> : vector<8x128xf32>
    %19 = tpu.matmul %16, %18, %cst_14 {dimension_numbers = #tpu.dot_dimension_numbers<[1], [0], [0], [1], [0, 0, 1, 1], [], []>} : vector<8x256xf32>, vector<256x128xf32>, vector<8x128xf32> -> vector<8x128xf32>
    %c0_15 = arith.constant 0 : index
    %c0_16 = arith.constant 0 : index
    %20 = vector.load %arg7[%c0_15, %c0_16] : memref<1x128xf32, #tpu.memory_space<vmem>>, vector<1x128xf32>
    %21 = vector.broadcast %20 : vector<1x128xf32> to vector<8x128xf32>
    %22 = arith.addf %19, %21 : vector<8x128xf32>
    %23 = tpu.iota {dimensions = array<i32: 1>} : vector<8x128xi32>
    %c4_i32 = arith.constant 4 : i32
    %24 = vector.broadcast %c4_i32 : i32 to vector<8x128xi32>
    %25 = arith.cmpi sge, %23, %24 : vector<8x128xi32>
    %c8_i32 = arith.constant 8 : i32
    %26 = vector.broadcast %c8_i32 : i32 to vector<8x128xi32>
    %27 = arith.cmpi slt, %23, %26 : vector<8x128xi32>
    %28 = arith.andi %25, %27 : vector<8x128xi1>
    %cst_17 = arith.constant -2.000000e+01 : f32
    %cst_18 = arith.constant 2.000000e+00 : f32
    %29 = vector.broadcast %cst_17 : f32 to vector<8x128xf32>
    %30 = arith.maximumf %29, %22 : vector<8x128xf32>
    %31 = vector.broadcast %cst_18 : f32 to vector<8x128xf32>
    %32 = arith.minimumf %31, %30 : vector<8x128xf32>
    %33 = arith.select %28, %32, %22 : vector<8x128xi1>, vector<8x128xf32>
    %c0_19 = arith.constant 0 : index
    %c0_20 = arith.constant 0 : index
    %34 = vector.load %arg8[%c0_19, %c0_20] : memref<8x128xf32, #tpu.memory_space<vmem>>, vector<8x128xf32>
    tpu.vector_store %arg8[%c0_19, %c0_20], %33 {strides = array<i32>} : memref<8x128xf32, #tpu.memory_space<vmem>>, vector<8x128xf32>,
    return
  }
  func.func @transform_0(%arg0: i32) -> (i32, i32) {
    %c0_i32 = arith.constant 0 : i32
    %c0_i32_0 = arith.constant 0 : i32
    return %arg0, %c0_i32 : i32, i32
  }
  func.func @transform_1(%arg0: i32) -> (i32, i32) {
    %c0_i32 = arith.constant 0 : i32
    %c0_i32_0 = arith.constant 0 : i32
    %c0_i32_1 = arith.constant 0 : i32
    return %c0_i32, %c0_i32_0 : i32, i32
  }
  func.func @transform_2(%arg0: i32) -> (i32, i32) {
    %c0_i32 = arith.constant 0 : i32
    %c0_i32_0 = arith.constant 0 : i32
    %c0_i32_1 = arith.constant 0 : i32
    return %c0_i32, %c0_i32_0 : i32, i32
  }
  func.func @transform_3(%arg0: i32) -> (i32, i32) {
    %c0_i32 = arith.constant 0 : i32
    %c0_i32_0 = arith.constant 0 : i32
    %c0_i32_1 = arith.constant 0 : i32
    return %c0_i32, %c0_i32_0 : i32, i32
  }
  func.func @transform_4(%arg0: i32) -> (i32, i32) {
    %c0_i32 = arith.constant 0 : i32
    %c0_i32_0 = arith.constant 0 : i32
    %c0_i32_1 = arith.constant 0 : i32
    return %c0_i32, %c0_i32_0 : i32, i32
  }
  func.func @transform_5(%arg0: i32) -> (i32, i32) {
    %c0_i32 = arith.constant 0 : i32
    %c0_i32_0 = arith.constant 0 : i32
    %c0_i32_1 = arith.constant 0 : i32
    return %c0_i32, %c0_i32_0 : i32, i32
  }
  func.func @transform_6(%arg0: i32) -> (i32, i32) {
    %c0_i32 = arith.constant 0 : i32
    %c0_i32_0 = arith.constant 0 : i32
    %c0_i32_1 = arith.constant 0 : i32
    return %c0_i32, %c0_i32_0 : i32, i32
  }
  func.func @transform_7(%arg0: i32) -> (i32, i32) {
    %c0_i32 = arith.constant 0 : i32
    %c0_i32_0 = arith.constant 0 : i32
    return %arg0, %c0_i32 : i32, i32
  }
}

</mosaic_0001>

<llo_original>
// kernel: tpu_custom_call.1
$region0: #{tpu_custom_call.1}
  #allocation0 [shape = 'u32[]', space=smem, size = 0x4, offset = 0x4, fixed_abs, tag = 'smem constant byte address 0x4 - core index']
  #allocation1 [shape = 'u32[144,128]{1,0:T(1,128)}', space=vmem, size = 0x12000, scoped, tag = 'internal scratch']
  %s0 = inlined_call_operand.hbm [shape: f32[8,8], index: 0, kind: input, shape index: {}]
  %s1 = inlined_call_operand.hbm [shape: bf16[8,256], index: 1, kind: input, shape index: {}]
  %s2 = inlined_call_operand.vmem [shape: f32[1,256], index: 2, kind: input, shape index: {}]
  %s3 = inlined_call_operand.hbm [shape: bf16[256,256], index: 3, kind: input, shape index: {}]
  %s4 = inlined_call_operand.vmem [shape: f32[1,256], index: 4, kind: input, shape index: {}]
  %s5 = inlined_call_operand.hbm [shape: bf16[256,128], index: 5, kind: input, shape index: {}]
  %s6 = inlined_call_operand.vmem [shape: f32[1,128], index: 6, kind: input, shape index: {}]
  %s7 = inlined_call_operand.hbm [shape: f32[8,128], index: 7, kind: output, shape index: {}]
  %s8 = sld [smem:[#allocation0]]
  $region54: #{tpu_custom_call.1} parent=0
    _
  %s10 = ssub.s32 1, %s8
  %s11 = scalar_select 0, %s10, %s8
  $region1: #{tpu_custom_call.1} parent=0
    #allocation2 [shape = 'u8[4096]{0}', space=vmem, size = 0x1000, scoped, tag = 'input window, operand 0, single buffered']
    #allocation3 [shape = 's32[1]{0}', space=sflag, size = 0x4, scoped, tag = 'scoped memory for tpu_custom_call.1']
    #allocation4 [shape = 's32[1]{0}', space=sflag, size = 0x4, scoped, tag = 'scoped memory for tpu_custom_call.1']
    #allocation5 [shape = 'u8[4096]{0}', space=vmem, size = 0x1000, scoped, tag = 'input window, operand 1, single buffered']
    #allocation6 [shape = 's32[1]{0}', space=sflag, size = 0x4, scoped, tag = 'scoped memory for tpu_custom_call.1']
    #allocation7 [shape = 'u8[131072]{0}', space=vmem, size = 0x20000, scoped, tag = 'input window, operand 3, single buffered']
    #allocation8 [shape = 'u8[65536]{0}', space=vmem, size = 0x10000, scoped, tag = 'input window, operand 5, single buffered']
    #allocation9 [shape = 's32[1]{0}', space=sflag, size = 0x4, scoped, tag = 'scoped memory for tpu_custom_call.1']
    #allocation10 [shape = 'u8[4096]{0}', space=vmem, size = 0x1000, scoped, tag = 'output window, operand 0, single buffered']
    %12 = vsyncpa [#allocation3], 0
    %13 = vsyncpa [#allocation6], 0
    %14 = vsyncpa [#allocation9], 0
    %15 = vsyncpa [#allocation4], 0
    // Predicated region
    $region2: #{tpu_custom_call.1} parent=1 // pred_check
      _
    $region3: #{tpu_custom_call.1} parent=1 // pred_check_branch
      %17 = sbr.rel (0) target = $region5
    $region4: #{tpu_custom_call.1} parent=1 // pred_region
      %s19 = ssub.s32 128, 128
      %20 = vsyncadd [#allocation3], %s19
      %s22 = sshll.u32 [#allocation2], 4
      %s23 = int_to_ptr.vmem [resolvable:$true] %s22
      %25 = dma.hbm_to_vmem [thread:$0]  %s0, 128, %s23, [#allocation3]
    $region5: #{tpu_custom_call.1} parent=1 // pred_fallthru
      _
    // Predicated region
    $region6: #{tpu_custom_call.1} parent=1 // pred_check
      _
    $region7: #{tpu_custom_call.1} parent=1 // pred_check_branch
      %27 = sbr.rel (0) target = $region9
    $region8: #{tpu_custom_call.1} parent=1 // pred_region
      %s29 = ssub.s32 128, 128
      %30 = vsyncadd [#allocation6], %s29
      %s32 = sshll.u32 [#allocation5], 4
      %s33 = int_to_ptr.vmem [resolvable:$true] %s32
      %35 = dma.hbm_to_vmem [thread:$0]  %s1, 128, %s33, [#allocation6]
    $region9: #{tpu_custom_call.1} parent=1 // pred_fallthru
      _
    // Predicated region
    $region10: #{tpu_custom_call.1} parent=1 // pred_check
      _
    $region11: #{tpu_custom_call.1} parent=1 // pred_check_branch
      %37 = sbr.rel (0) target = $region13
    $region12: #{tpu_custom_call.1} parent=1 // pred_region
      _
    $region13: #{tpu_custom_call.1} parent=1 // pred_fallthru
      _
    // Predicated region
    $region14: #{tpu_custom_call.1} parent=1 // pred_check
      _
    $region15: #{tpu_custom_call.1} parent=1 // pred_check_branch
      %39 = sbr.rel (0) target = $region17
    $region16: #{tpu_custom_call.1} parent=1 // pred_region
      %s41 = ssub.s32 4096, 4096
      %42 = vsyncadd [#allocation6], %s41
      %s43 = sshll.u32 [#allocation7], 4
      %s44 = int_to_ptr.vmem [resolvable:$true] %s43
      %49 = dma.hbm_to_vmem [thread:$0]  %s3, 4096, %s44, [#allocation6], 128, 128, 8
    $region17: #{tpu_custom_call.1} parent=1 // pred_fallthru
      _
    // Predicated region
    $region18: #{tpu_custom_call.1} parent=1 // pred_check
      _
    $region19: #{tpu_custom_call.1} parent=1 // pred_check_branch
      %51 = sbr.rel (0) target = $region21
    $region20: #{tpu_custom_call.1} parent=1 // pred_region
      _
    $region21: #{tpu_custom_call.1} parent=1 // pred_fallthru
      _
    // Predicated region
    $region22: #{tpu_custom_call.1} parent=1 // pred_check
      _
    $region23: #{tpu_custom_call.1} parent=1 // pred_check_branch
      %53 = sbr.rel (0) target = $region25
    $region24: #{tpu_custom_call.1} parent=1 // pred_region
      %s55 = ssub.s32 2048, 2048
      %56 = vsyncadd [#allocation9], %s55
      %s57 = sshll.u32 [#allocation8], 4
      %s58 = int_to_ptr.vmem [resolvable:$true] %s57
      %63 = dma.hbm_to_vmem [thread:$0]  %s5, 2048, %s58, [#allocation9], 64, 64, 4
    $region25: #{tpu_custom_call.1} parent=1 // pred_fallthru
      _
    // Predicated region
    $region26: #{tpu_custom_call.1} parent=1 // pred_check
      _
    $region27: #{tpu_custom_call.1} parent=1 // pred_check_branch
      %65 = sbr.rel (0) target = $region29
    $region28: #{tpu_custom_call.1} parent=1 // pred_region
      _
    $region29: #{tpu_custom_call.1} parent=1 // pred_fallthru
      _
    // Predicated region
    $region30: #{tpu_custom_call.1} parent=1 // pred_check
      _
    $region31: #{tpu_custom_call.1} parent=1 // pred_check_branch
      %67 = sbr.rel (0) target = $region33
    $region32: #{tpu_custom_call.1} parent=1 // pred_region
      %68 = dma.done [#allocation3], 128
    $region33: #{tpu_custom_call.1} parent=1 // pred_fallthru
      _
    // Predicated region
    $region34: #{tpu_custom_call.1} parent=1 // pred_check
      _
    $region35: #{tpu_custom_call.1} parent=1 // pred_check_branch
      %70 = sbr.rel (0) target = $region37
    $region36: #{tpu_custom_call.1} parent=1 // pred_region
      %71 = dma.done [#allocation6], 128
    $region37: #{tpu_custom_call.1} parent=1 // pred_fallthru
      _
    // Predicated region
    $region38: #{tpu_custom_call.1} parent=1 // pred_check
      _
    $region39: #{tpu_custom_call.1} parent=1 // pred_check_branch
      %73 = sbr.rel (0) target = $region41
    $region40: #{tpu_custom_call.1} parent=1 // pred_region
      %74 = dma.done [#allocation6], 4096
    $region41: #{tpu_custom_call.1} parent=1 // pred_fallthru
      _
    // Predicated region
    $region42: #{tpu_custom_call.1} parent=1 // pred_check
      _
    $region43: #{tpu_custom_call.1} parent=1 // pred_check_branch
      %76 = sbr.rel (0) target = $region45
    $region44: #{tpu_custom_call.1} parent=1 // pred_region
      %77 = dma.done [#allocation9], 2048
    $region45: #{tpu_custom_call.1} parent=1 // pred_fallthru
      _
    %v78 = vld [vmem:[#allocation2] sm:$0xff]
    %v79 = vld [vmem:[#allocation5] sm:$0xff]
    %v80 = vunpack.c.l.bf16 %v79
    %v81 = vunpack.c.h.bf16 %v79
    %v82 = vld [vmem:[%s2] sm:$0x3]
    %v84 = vlaneseq
    %v85 = vshrl.u32 %v84, 7
    %v86 = vsub.s32 0, %v85
    %v87 = vrot.slane %v82, %v86
    %v88 = vlaneseq
    %v89 = vshrl.u32 %v88, 7
    %v90 = vsub.s32 1, %v89
    %v91 = vrot.slane %v82, %v90
    %vm94 = vcmask 64512
    %v96 = vsel %vm94, %v78, 0
    %98 = vmatprep.subr.mxu0 0.0
    %99 = vmatpush1.msra.mxu0 0.0
    %100 = vmatprep.subr.mxu0 0.0
    %101 = vmatpush1.msra.mxu0 0.0
    %102 = vmatprep.subr.mxu0 0.0
    %103 = vmatpush1.msra.mxu0 0.0
    %104 = vmatprep.subr.mxu0 0.0
    %105 = vmatpush1.msra.mxu0 0.0
    %106 = vmatprep.subr.mxu0 0.0
    %107 = vmatpush1.msra.mxu0 0.0
    %108 = vmatprep.subr.mxu0 0.0
    %109 = vmatpush1.msra.mxu0 0.0
    %110 = vmatprep.subr.mxu0 0.0
    %111 = vmatpush1.msra.mxu0 0.0
    %112 = vmatprep.subr.mxu0 0.0
    %113 = vmatpush1.msra.mxu0 0.0
    %114 = vmatprep.subr.mxu0 0.0
    %115 = vmatpush1.msra.mxu0 0.0
    %116 = vmatprep.subr.mxu0 0.0
    %117 = vmatpush1.msra.mxu0 0.0
    %118 = vmatprep.subr.mxu0 0.0
    %119 = vmatpush1.msra.mxu0 0.0
    %120 = vmatprep.subr.mxu0 0.0
    %121 = vmatpush1.msra.mxu0 0.0
    %122 = vmatprep.subr.mxu0 0.0
    %123 = vmatpush1.msra.mxu0 0.0
    %124 = vmatprep.subr.mxu0 0.0
    %125 = vmatpush1.msra.mxu0 0.0
    %126 = vmatprep.subr.mxu0 0.0
    %127 = vmatpush1.msra.mxu0 0.0
    %128 = vmatprep.subr.mxu0 %v81
    %129 = vmatpush1.msra.mxu0 %v80
    %130 = vmatprep.subr.mxu0 0.0
    %131 = vmatpush2.msra.mxu0 0.0
    %132 = vmatprep.subr.mxu0 0.0
    %133 = vmatpush2.msra.mxu0 0.0
    %134 = vmatprep.subr.mxu0 0.0
    %135 = vmatpush2.msra.mxu0 0.0
    %136 = vmatprep.subr.mxu0 0.0
    %137 = vmatpush2.msra.mxu0 0.0
    %138 = vmatprep.subr.mxu0 0.0
    %139 = vmatpush2.msra.mxu0 0.0
    %140 = vmatprep.subr.mxu0 0.0
    %141 = vmatpush2.msra.mxu0 0.0
    %142 = vmatprep.subr.mxu0 0.0
    %143 = vmatpush2.msra.mxu0 0.0
    %144 = vmatprep.subr.mxu0 0.0
    %145 = vmatpush2.msra.mxu0 0.0
    %146 = vmatprep.subr.mxu0 0.0
    %147 = vmatpush2.msra.mxu0 0.0
    %148 = vmatprep.subr.mxu0 0.0
    %149 = vmatpush2.msra.mxu0 0.0
    %150 = vmatprep.subr.mxu0 0.0
    %151 = vmatpush2.msra.mxu0 0.0
    %152 = vmatprep.subr.mxu0 0.0
    %153 = vmatpush2.msra.mxu0 0.0
    %154 = vmatprep.subr.mxu0 0.0
    %155 = vmatpush2.msra.mxu0 0.0
    %156 = vmatprep.subr.mxu0 0.0
    %157 = vmatpush2.msra.mxu0 0.0
    %158 = vmatprep.subr.mxu0 0.0
    %159 = vmatpush2.msra.mxu0 0.0
    %160 = vmatprep.subr.mxu0 0.0
    %161 = vmatpush2.msra.mxu0 0.0
    %162 = vmatprep.mubr.f32.mxu0 0.0
    %163 = vmatmul.mubr.f32.gmra.mxu0 %v96
    %v164 = vpop.f32.mrf.mxu0
    %v165 = vadd.f32 %v87, %v164
    %v166 = vpop.f32.mrf.mxu0
    %v167 = vadd.f32 %v91, %v166
    %168 = vdwg.mxu0
    %v169 = vmax.f32 %v165, 0.0
    %v170 = vmax.f32 %v167, 0.0
    %v171 = vld [vmem:[#allocation7] sm:$0xff]
    %v172 = vld [vmem:[#allocation7 + $0x8] sm:$0xff]
    %v173 = vld [vmem:[#allocation7 + $0x10] sm:$0xff]
    %v174 = vld [vmem:[#allocation7 + $0x18] sm:$0xff]
    %v175 = vld [vmem:[#allocation7 + $0x20] sm:$0xff]
    %v176 = vld [vmem:[#allocation7 + $0x28] sm:$0xff]
    %v177 = vld [vmem:[#allocation7 + $0x30] sm:$0xff]
    %v178 = vld [vmem:[#allocation7 + $0x38] sm:$0xff]
    %v179 = vld [vmem:[#allocation7 + $0x40] sm:$0xff]
    %v180 = vld [vmem:[#allocation7 + $0x48] sm:$0xff]
    %v181 = vld [vmem:[#allocation7 + $0x50] sm:$0xff]
    %v182 = vld [vmem:[#allocation7 + $0x58] sm:$0xff]
    %v183 = vld [vmem:[#allocation7 + $0x60] sm:$0xff]
    %v184 = vld [vmem:[#allocation7 + $0x68] sm:$0xff]
    %v185 = vld [vmem:[#allocation7 + $0x70] sm:$0xff]
    %v186 = vld [vmem:[#allocation7 + $0x78] sm:$0xff]
    %v187 = vld [vmem:[#allocation7 + $0x80] sm:$0xff]
    %v188 = vld [vmem:[#allocation7 + $0x88] sm:$0xff]
    %v189 = vld [vmem:[#allocation7 + $0x90] sm:$0xff]
    %v190 = vld [vmem:[#allocation7 + $0x98] sm:$0xff]
    %v191 = vld [vmem:[#allocation7 + $0xa0] sm:$0xff]
    %v192 = vld [vmem:[#allocation7 + $0xa8] sm:$0xff]
    %v193 = vld [vmem:[#allocation7 + $0xb0] sm:$0xff]
    %v194 = vld [vmem:[#allocation7 + $0xb8] sm:$0xff]
    %v195 = vld [vmem:[#allocation7 + $0xc0] sm:$0xff]
    %v196 = vld [vmem:[#allocation7 + $0xc8] sm:$0xff]
    %v197 = vld [vmem:[#allocation7 + $0xd0] sm:$0xff]
    %v198 = vld [vmem:[#allocation7 + $0xd8] sm:$0xff]
    %v199 = vld [vmem:[#allocation7 + $0xe0] sm:$0xff]
    %v200 = vld [vmem:[#allocation7 + $0xe8] sm:$0xff]
    %v201 = vld [vmem:[#allocation7 + $0xf0] sm:$0xff]
    %v202 = vld [vmem:[#allocation7 + $0xf8] sm:$0xff]
    %v203 = vunpack.c.l.bf16 %v171
    %v204 = vunpack.c.h.bf16 %v171
    %v205 = vunpack.c.l.bf16 %v172
    %v206 = vunpack.c.h.bf16 %v172
    %v207 = vunpack.c.l.bf16 %v173
    %v208 = vunpack.c.h.bf16 %v173
    %v209 = vunpack.c.l.bf16 %v174
    %v210 = vunpack.c.h.bf16 %v174
    %v211 = vunpack.c.l.bf16 %v175
    %v212 = vunpack.c.h.bf16 %v175
    %v213 = vunpack.c.l.bf16 %v176
    %v214 = vunpack.c.h.bf16 %v176
    %v215 = vunpack.c.l.bf16 %v177
    %v216 = vunpack.c.h.bf16 %v177
    %v217 = vunpack.c.l.bf16 %v178
    %v218 = vunpack.c.h.bf16 %v178
    %v219 = vunpack.c.l.bf16 %v179
    %v220 = vunpack.c.h.bf16 %v179
    %v221 = vunpack.c.l.bf16 %v180
    %v222 = vunpack.c.h.bf16 %v180
    %v223 = vunpack.c.l.bf16 %v181
    %v224 = vunpack.c.h.bf16 %v181
    %v225 = vunpack.c.l.bf16 %v182
    %v226 = vunpack.c.h.bf16 %v182
    %v227 = vunpack.c.l.bf16 %v183
    %v228 = vunpack.c.h.bf16 %v183
    %v229 = vunpack.c.l.bf16 %v184
    %v230 = vunpack.c.h.bf16 %v184
    %v231 = vunpack.c.l.bf16 %v185
    %v232 = vunpack.c.h.bf16 %v185
    %v233 = vunpack.c.l.bf16 %v186
    %v234 = vunpack.c.h.bf16 %v186
    %v235 = vunpack.c.l.bf16 %v187
    %v236 = vunpack.c.h.bf16 %v187
    %v237 = vunpack.c.l.bf16 %v188
    %v238 = vunpack.c.h.bf16 %v188
    %v239 = vunpack.c.l.bf16 %v189
    %v240 = vunpack.c.h.bf16 %v189
    %v241 = vunpack.c.l.bf16 %v190
    %v242 = vunpack.c.h.bf16 %v190
    %v243 = vunpack.c.l.bf16 %v191
    %v244 = vunpack.c.h.bf16 %v191
    %v245 = vunpack.c.l.bf16 %v192
    %v246 = vunpack.c.h.bf16 %v192
    %v247 = vunpack.c.l.bf16 %v193
    %v248 = vunpack.c.h.bf16 %v193
    %v249 = vunpack.c.l.bf16 %v194
    %v250 = vunpack.c.h.bf16 %v194
    %v251 = vunpack.c.l.bf16 %v195
    %v252 = vunpack.c.h.bf16 %v195
    %v253 = vunpack.c.l.bf16 %v196
    %v254 = vunpack.c.h.bf16 %v196
    %v255 = vunpack.c.l.bf16 %v197
    %v256 = vunpack.c.h.bf16 %v197
    %v257 = vunpack.c.l.bf16 %v198
    %v258 = vunpack.c.h.bf16 %v198
    %v259 = vunpack.c.l.bf16 %v199
    %v260 = vunpack.c.h.bf16 %v199
    %v261 = vunpack.c.l.bf16 %v200
    %v262 = vunpack.c.h.bf16 %v200
    %v263 = vunpack.c.l.bf16 %v201
    %v264 = vunpack.c.h.bf16 %v201
    %v265 = vunpack.c.l.bf16 %v202
    %v266 = vunpack.c.h.bf16 %v202
    %v267 = vld [vmem:[%s4] sm:$0x3]
    %v269 = vlaneseq
    %v270 = vshrl.u32 %v269, 7
    %v271 = vsub.s32 0, %v270
    %v272 = vrot.slane %v267, %v271
    %v273 = vlaneseq
    %v274 = vshrl.u32 %v273, 7
    %v275 = vsub.s32 1, %v274
    %v276 = vrot.slane %v267, %v275
    %279 = vmatprep.subr.mxu0 %v234
    %280 = vmatpush1.msra.mxu0 %v233
    %281 = vmatprep.subr.mxu0 %v232
    %282 = vmatpush1.msra.mxu0 %v231
    %283 = vmatprep.subr.mxu0 %v230
    %284 = vmatpush1.msra.mxu0 %v229
    %285 = vmatprep.subr.mxu0 %v228
    %286 = vmatpush1.msra.mxu0 %v227
    %287 = vmatprep.subr.mxu0 %v226
    %288 = vmatpush1.msra.mxu0 %v225
    %289 = vmatprep.subr.mxu0 %v224
    %290 = vmatpush1.msra.mxu0 %v223
    %291 = vmatprep.subr.mxu0 %v222
    %292 = vmatpush1.msra.mxu0 %v221
    %293 = vmatprep.subr.mxu0 %v220
    %294 = vmatpush1.msra.mxu0 %v219
    %295 = vmatprep.subr.mxu0 %v218
    %296 = vmatpush1.msra.mxu0 %v217
    %297 = vmatprep.subr.mxu0 %v216
    %298 = vmatpush1.msra.mxu0 %v215
    %299 = vmatprep.subr.mxu0 %v214
    %300 = vmatpush1.msra.mxu0 %v213
    %301 = vmatprep.subr.mxu0 %v212
    %302 = vmatpush1.msra.mxu0 %v211
    %303 = vmatprep.subr.mxu0 %v210
    %304 = vmatpush1.msra.mxu0 %v209
    %305 = vmatprep.subr.mxu0 %v208
    %306 = vmatpush1.msra.mxu0 %v207
    %307 = vmatprep.subr.mxu0 %v206
    %308 = vmatpush1.msra.mxu0 %v205
    %309 = vmatprep.subr.mxu0 %v204
    %310 = vmatpush1.msra.mxu0 %v203
    %311 = vmatprep.subr.mxu0 %v266
    %312 = vmatpush2.msra.mxu0 %v265
    %313 = vmatprep.subr.mxu0 %v264
    %314 = vmatpush2.msra.mxu0 %v263
    %315 = vmatprep.subr.mxu0 %v262
    %316 = vmatpush2.msra.mxu0 %v261
    %317 = vmatprep.subr.mxu0 %v260
    %318 = vmatpush2.msra.mxu0 %v259
    %319 = vmatprep.subr.mxu0 %v258
    %320 = vmatpush2.msra.mxu0 %v257
    %321 = vmatprep.subr.mxu0 %v256
    %322 = vmatpush2.msra.mxu0 %v255
    %323 = vmatprep.subr.mxu0 %v254
    %324 = vmatpush2.msra.mxu0 %v253
    %325 = vmatprep.subr.mxu0 %v252
    %326 = vmatpush2.msra.mxu0 %v251
    %327 = vmatprep.subr.mxu0 %v250
    %328 = vmatpush2.msra.mxu0 %v249
    %329 = vmatprep.subr.mxu0 %v248
    %330 = vmatpush2.msra.mxu0 %v247
    %331 = vmatprep.subr.mxu0 %v246
    %332 = vmatpush2.msra.mxu0 %v245
    %333 = vmatprep.subr.mxu0 %v244
    %334 = vmatpush2.msra.mxu0 %v243
    %335 = vmatprep.subr.mxu0 %v242
    %336 = vmatpush2.msra.mxu0 %v241
    %337 = vmatprep.subr.mxu0 %v240
    %338 = vmatpush2.msra.mxu0 %v239
    %339 = vmatprep.subr.mxu0 %v238
    %340 = vmatpush2.msra.mxu0 %v237
    %341 = vmatprep.subr.mxu0 %v236
    %342 = vmatpush2.msra.mxu0 %v235
    %343 = vmatprep.mubr.f32.mxu0 %v170
    %344 = vmatmul.mubr.f32.gmra.mxu0 %v169
    %v345 = vpop.f32.mrf.mxu0
    %v346 = vadd.f32 %v272, %v345
    %v347 = vpop.f32.mrf.mxu0
    %v348 = vadd.f32 %v276, %v347
    %349 = vdwg.mxu0
    %v350 = vmax.f32 %v346, 0.0
    %v351 = vmax.f32 %v348, 0.0
    %v352 = vld [vmem:[#allocation8] sm:$0xf]
    %v353 = vld [vmem:[#allocation8 + $0x4] sm:$0xf]
    %v354 = vld [vmem:[#allocation8 + $0x8] sm:$0xf]
    %v355 = vld [vmem:[#allocation8 + $0xc] sm:$0xf]
    %v356 = vld [vmem:[#allocation8 + $0x10] sm:$0xf]
    %v357 = vld [vmem:[#allocation8 + $0x14] sm:$0xf]
    %v358 = vld [vmem:[#allocation8 + $0x18] sm:$0xf]
    %v359 = vld [vmem:[#allocation8 + $0x1c] sm:$0xf]
    %v360 = vld [vmem:[#allocation8 + $0x20] sm:$0xf]
    %v361 = vld [vmem:[#allocation8 + $0x24] sm:$0xf]
    %v362 = vld [vmem:[#allocation8 + $0x28] sm:$0xf]
    %v363 = vld [vmem:[#allocation8 + $0x2c] sm:$0xf]
    %v364 = vld [vmem:[#allocation8 + $0x30] sm:$0xf]
    %v365 = vld [vmem:[#allocation8 + $0x34] sm:$0xf]
    %v366 = vld [vmem:[#allocation8 + $0x38] sm:$0xf]
    %v367 = vld [vmem:[#allocation8 + $0x3c] sm:$0xf]
    %v368 = vld [vmem:[#allocation8 + $0x40] sm:$0xf]
    %v369 = vld [vmem:[#allocation8 + $0x44] sm:$0xf]
    %v370 = vld [vmem:[#allocation8 + $0x48] sm:$0xf]
    %v371 = vld [vmem:[#allocation8 + $0x4c] sm:$0xf]
    %v372 = vld [vmem:[#allocation8 + $0x50] sm:$0xf]
    %v373 = vld [vmem:[#allocation8 + $0x54] sm:$0xf]
    %v374 = vld [vmem:[#allocation8 + $0x58] sm:$0xf]
    %v375 = vld [vmem:[#allocation8 + $0x5c] sm:$0xf]
    %v376 = vld [vmem:[#allocation8 + $0x60] sm:$0xf]
    %v377 = vld [vmem:[#allocation8 + $0x64] sm:$0xf]
    %v378 = vld [vmem:[#allocation8 + $0x68] sm:$0xf]
    %v379 = vld [vmem:[#allocation8 + $0x6c] sm:$0xf]
    %v380 = vld [vmem:[#allocation8 + $0x70] sm:$0xf]
    %v381 = vld [vmem:[#allocation8 + $0x74] sm:$0xf]
    %v382 = vld [vmem:[#allocation8 + $0x78] sm:$0xf]
    %v383 = vld [vmem:[#allocation8 + $0x7c] sm:$0xf]
    %v384 = vunpack.c.l.bf16 %v352
    %v385 = vunpack.c.l.bf16 %v353
    %v386 = vunpack.c.l.bf16 %v354
    %v387 = vunpack.c.l.bf16 %v355
    %v388 = vunpack.c.l.bf16 %v356
    %v389 = vunpack.c.l.bf16 %v357
    %v390 = vunpack.c.l.bf16 %v358
    %v391 = vunpack.c.l.bf16 %v359
    %v392 = vunpack.c.l.bf16 %v360
    %v393 = vunpack.c.l.bf16 %v361
    %v394 = vunpack.c.l.bf16 %v362
    %v395 = vunpack.c.l.bf16 %v363
    %v396 = vunpack.c.l.bf16 %v364
    %v397 = vunpack.c.l.bf16 %v365
    %v398 = vunpack.c.l.bf16 %v366
    %v399 = vunpack.c.l.bf16 %v367
    %v400 = vunpack.c.l.bf16 %v368
    %v401 = vunpack.c.l.bf16 %v369
    %v402 = vunpack.c.l.bf16 %v370
    %v403 = vunpack.c.l.bf16 %v371
    %v404 = vunpack.c.l.bf16 %v372
    %v405 = vunpack.c.l.bf16 %v373
    %v406 = vunpack.c.l.bf16 %v374
    %v407 = vunpack.c.l.bf16 %v375
    %v408 = vunpack.c.l.bf16 %v376
    %v409 = vunpack.c.l.bf16 %v377
    %v410 = vunpack.c.l.bf16 %v378
    %v411 = vunpack.c.l.bf16 %v379
    %v412 = vunpack.c.l.bf16 %v380
    %v413 = vunpack.c.l.bf16 %v381
    %v414 = vunpack.c.l.bf16 %v382
    %v415 = vunpack.c.l.bf16 %v383
    %v416 = vld [vmem:[%s6] sm:$0x1]
    %v418 = vlaneseq
    %v419 = vshrl.u32 %v418, 7
    %v420 = vsub.s32 0, %v419
    %v421 = vrot.slane %v416, %v420
    %423 = vmatprep.subr.mxu0 0.0
    %424 = vmatpush1.msra.mxu0 %v399
    %425 = vmatprep.subr.mxu0 0.0
    %426 = vmatpush1.msra.mxu0 %v398
    %427 = vmatprep.subr.mxu0 0.0
    %428 = vmatpush1.msra.mxu0 %v397
    %429 = vmatprep.subr.mxu0 0.0
    %430 = vmatpush1.msra.mxu0 %v396
    %431 = vmatprep.subr.mxu0 0.0
    %432 = vmatpush1.msra.mxu0 %v395
    %433 = vmatprep.subr.mxu0 0.0
    %434 = vmatpush1.msra.mxu0 %v394
    %435 = vmatprep.subr.mxu0 0.0
    %436 = vmatpush1.msra.mxu0 %v393
    %437 = vmatprep.subr.mxu0 0.0
    %438 = vmatpush1.msra.mxu0 %v392
    %439 = vmatprep.subr.mxu0 0.0
    %440 = vmatpush1.msra.mxu0 %v391
    %441 = vmatprep.subr.mxu0 0.0
    %442 = vmatpush1.msra.mxu0 %v390
    %443 = vmatprep.subr.mxu0 0.0
    %444 = vmatpush1.msra.mxu0 %v389
    %445 = vmatprep.subr.mxu0 0.0
    %446 = vmatpush1.msra.mxu0 %v388
    %447 = vmatprep.subr.mxu0 0.0
    %448 = vmatpush1.msra.mxu0 %v387
    %449 = vmatprep.subr.mxu0 0.0
    %450 = vmatpush1.msra.mxu0 %v386
    %451 = vmatprep.subr.mxu0 0.0
    %452 = vmatpush1.msra.mxu0 %v385
    %453 = vmatprep.subr.mxu0 0.0
    %454 = vmatpush1.msra.mxu0 %v384
    %455 = vmatprep.subr.mxu0 0.0
    %456 = vmatpush2.msra.mxu0 %v415
    %457 = vmatprep.subr.mxu0 0.0
    %458 = vmatpush2.msra.mxu0 %v414
    %459 = vmatprep.subr.mxu0 0.0
    %460 = vmatpush2.msra.mxu0 %v413
    %461 = vmatprep.subr.mxu0 0.0
    %462 = vmatpush2.msra.mxu0 %v412
    %463 = vmatprep.subr.mxu0 0.0
    %464 = vmatpush2.msra.mxu0 %v411
    %465 = vmatprep.subr.mxu0 0.0
    %466 = vmatpush2.msra.mxu0 %v410
    %467 = vmatprep.subr.mxu0 0.0
    %468 = vmatpush2.msra.mxu0 %v409
    %469 = vmatprep.subr.mxu0 0.0
    %470 = vmatpush2.msra.mxu0 %v408
    %471 = vmatprep.subr.mxu0 0.0
    %472 = vmatpush2.msra.mxu0 %v407
    %473 = vmatprep.subr.mxu0 0.0
    %474 = vmatpush2.msra.mxu0 %v406
    %475 = vmatprep.subr.mxu0 0.0
    %476 = vmatpush2.msra.mxu0 %v405
    %477 = vmatprep.subr.mxu0 0.0
    %478 = vmatpush2.msra.mxu0 %v404
    %479 = vmatprep.subr.mxu0 0.0
    %480 = vmatpush2.msra.mxu0 %v403
    %481 = vmatprep.subr.mxu0 0.0
    %482 = vmatpush2.msra.mxu0 %v402
    %483 = vmatprep.subr.mxu0 0.0
    %484 = vmatpush2.msra.mxu0 %v401
    %485 = vmatprep.subr.mxu0 0.0
    %486 = vmatpush2.msra.mxu0 %v400
    %487 = vmatprep.mubr.f32.mxu0 %v351
    %488 = vmatmul.mubr.f32.gmra.mxu0 %v350
    %v489 = vpop.f32.mrf.mxu0
    %v490 = vadd.f32 %v421, %v489
    %v491 = vpop.f32.mrf.mxu0
    %492 = vdwg.mxu0
    %v493 = vlaneseq
    %v494 = vand.u32 %v493, 127
    %vm495 = vcmp.ge.s32.totalorder %v494, 4
    %vm496 = vcmp.lt.s32.totalorder %v494, 8
    %vm497 = vmand %vm495, %vm496
    %v498 = vmax.f32 %v490, -20.0
    %v499 = vmin.f32 %v498, 2.0
    %v500 = vsel %vm497, %v499, %v490
    %501 = vst [vmem:[#allocation10] sm:$0xff] %v500
    // Predicated region
    $region46: #{tpu_custom_call.1} parent=1 // pred_check
      _
    $region47: #{tpu_custom_call.1} parent=1 // pred_check_branch
      %503 = sbr.rel (0) target = $region49
    $region48: #{tpu_custom_call.1} parent=1 // pred_region
      %s505 = ssub.s32 128, 128
      %506 = vsyncadd [#allocation4], %s505
      %s508 = sshll.u32 [#allocation10], 4
      %s509 = int_to_ptr.vmem [resolvable:$true] %s508
      %511 = dma.vmem_to_hbm [thread:$0]  %s509, 128, %s7, [#allocation4]
    $region49: #{tpu_custom_call.1} parent=1 // pred_fallthru
      _
    // Predicated region
    $region50: #{tpu_custom_call.1} parent=1 // pred_check
      _
    $region51: #{tpu_custom_call.1} parent=1 // pred_check_branch
      %513 = sbr.rel (0) target = $region53
    $region52: #{tpu_custom_call.1} parent=1 // pred_region
      %514 = dma.done [#allocation4], 128
    $region53: #{tpu_custom_call.1} parent=1 // pred_fallthru
      _
    %515 = vsyncpa [#allocation3], 1
    %516 = vsyncpa [#allocation6], 1
    %517 = vsyncpa [#allocation9], 1
    %518 = vsyncpa [#allocation4], 1

</llo_original>
